<compile_context>
chip_gen: v6e
topology: v6e:2x2x1
jax: 0.10.0
libtpu: 0.0.40
codegen_flags: <defaults>
</compile_context>

<pallas_src>
import functools

import jax
import jax.numpy as jnp
from jax.experimental import pallas as pl
from jax.experimental.pallas import tpu as pltpu

LN_EPS = 1e-5        # nn.LayerNorm default
BATCH_TILE = 256     # rows per grid step once the batch is large (v7x megacore)


def _round_up(n, m):
    return ((n + m - 1) // m) * m


# ---------------------------------------------------------------------------
# Fused kernel: whole MLP in one body (layer count is static -> Python loop
# unrolls at trace time; activations stay in vregs/VMEM).
# ---------------------------------------------------------------------------
def _make_fused_mlp_kernel(num_blocks, stacked):
    def kernel(*refs):
        x_ref = refs[0]
        wout_ref, bout_ref, o_ref = refs[-3], refs[-2], refs[-1]

        if stacked:
            w1_ref, wrest_ref, bgb_ref = refs[1], refs[2], refs[3]

            def load_w(l):
                return w1_ref[...] if l == 0 else wrest_ref[l - 1]

            def load_row(l, r):                       # (1, H) bias/gamma/beta
                return bgb_ref[pl.ds(3 * l + r, 1), :]
        else:
            def load_w(l):
                return refs[1 + 2 * l][...]

            def load_row(l, r):
                return refs[2 + 2 * l][pl.ds(r, 1), :]

        x = x_ref[...].astype(jnp.float32)
        for l in range(num_blocks):
            w = load_w(l)
            y = jnp.dot(x, w, preferred_element_type=jnp.float32) + load_row(l, 0)
            # LayerNorm with single-pass moments: both lane reductions are
            # independent so they can overlap in the XLU. Biased variance
            # (PyTorch default), clamped at 0 against f32 cancellation.
            inv_n = 1.0 / y.shape[-1]
            s1 = jnp.sum(y, axis=-1, keepdims=True)
            s2 = jnp.sum(y * y, axis=-1, keepdims=True)
            mean = s1 * inv_n
            var = jnp.maximum(s2 * inv_n - mean * mean, 0.0)
            y = (y - mean) * jax.lax.rsqrt(var + LN_EPS)
            y = y * load_row(l, 1) + load_row(l, 2)
            x = jnp.maximum(y, 0.0)                   # ReLU; Dropout(p=0) == id

        o_ref[...] = (jnp.dot(x, wout_ref[...], preferred_element_type=jnp.float32)
                      + bout_ref[...]).astype(o_ref.dtype)

    return kernel


# ---------------------------------------------------------------------------
# Forward wrapper: one pallas_call, everything VMEM-resident.
# ---------------------------------------------------------------------------
@functools.partial(jax.jit, static_argnames=("out_dim",))
def simple_mlp_forward(params, x, *, out_dim):
    B, in_dim = x.shape
    stacked = not isinstance(params["bgb"], (list, tuple))
    if stacked:
        num_blocks = params["bgb"].shape[0] // 3
        layer_ops = [params["w1"], params["w_rest"], params["bgb"]]
    else:
        num_blocks = len(params["bgb"])
        ws = [params["w1"]] + list(params["w_rest"])
        layer_ops = []
        for w, bgb in zip(ws, params["bgb"]):
            layer_ops += [w, bgb]

    out_w, out_b = params["out_w"], params["out_b"]   # pre-padded at init
    out_pad = out_w.shape[1]

    # Sublane-pad the batch only when needed; use a batch grid for large B.
    if B >= 2 * BATCH_TILE:
        bt = BATCH_TILE
        b_pad = _round_up(B, bt)
    else:
        bt = b_pad = _round_up(max(B, 8), 8)
    if b_pad != B:
        x = jnp.pad(x, ((0, b_pad - B), (0, 0)))

    operands = [x] + layer_ops + [out_w, out_b]
    kernel = _make_fused_mlp_kernel(num_blocks, stacked)
    out_shape = jax.ShapeDtypeStruct((b_pad, out_pad), jnp.float32)

    if b_pad == bt:
        # Single invocation, no grid: full-array VMEM specs, no pipeline
        # machinery or double buffering.
        vmem = pl.BlockSpec(memory_space=pltpu.MemorySpace.VMEM)
        out = pl.pallas_call(
            kernel,
            out_shape=out_shape,
            in_specs=[vmem] * len(operands),
            out_specs=vmem,
        )(*operands)
    else:
        # Batch-tiled grid: shards rows across TensorCores on v7x; weights
        # keep whole-array blocks.
        def full_spec(a):
            nd = a.ndim
            return pl.BlockSpec(a.shape, lambda i, _nd=nd: (0,) * _nd)

        in_specs = [pl.BlockSpec((bt, in_dim), lambda i: (i, 0))]
        in_specs += [full_spec(a) for a in (layer_ops + [out_w, out_b])]
        out = pl.pallas_call(
            kernel,
            grid=(b_pad // bt,),
            out_shape=out_shape,
            in_specs=in_specs,
            out_specs=pl.BlockSpec((bt, out_pad), lambda i: (i, 0)),
            compiler_params=pltpu.CompilerParams(
                dimension_semantics=("parallel",)),
        )(*operands)

    if b_pad != B or out_pad != out_dim:
        out = out[:B, :out_dim]
    return out


# ---------------------------------------------------------------------------
# Parameter construction (matches nn.Linear / nn.LayerNorm init ranges).
# Output projection is lane-padded here, ONCE, not per forward call.
# ---------------------------------------------------------------------------
def init_simple_mlp(key, input_dim, hidden_dims, output_dim):
    assert len(hidden_dims) >= 2
    dims = [input_dim] + list(hidden_dims)
    ws, bgbs = [], []
    for i in range(len(hidden_dims)):
        key, kw, kb = jax.random.split(key, 3)
        fan_in, fan_out = dims[i], dims[i + 1]
        bound = 1.0 / (fan_in ** 0.5)
        w = jax.random.uniform(kw, (fan_in, fan_out), jnp.float32, -bound, bound)
        b = jax.random.uniform(kb, (fan_out,), jnp.float32, -bound, bound)
        gamma = jnp.ones((fan_out,), jnp.float32)   # nn.LayerNorm defaults
        beta = jnp.zeros((fan_out,), jnp.float32)
        ws.append(w)
        bgbs.append(jnp.stack([b, gamma, beta], axis=0))   # (3, fan_out)

    key, kw, kb = jax.random.split(key, 3)
    bound = 1.0 / (hidden_dims[-1] ** 0.5)
    out_w = jax.random.uniform(kw, (hidden_dims[-1], output_dim),
                               jnp.float32, -bound, bound)
    out_b = jax.random.uniform(kb, (1, output_dim), jnp.float32, -bound, bound)
    out_pad = _round_up(max(output_dim, 128), 128)
    out_w = jnp.pad(out_w, ((0, 0), (0, out_pad - output_dim)))
    out_b = jnp.pad(out_b, ((0, 0), (0, out_pad - output_dim)))

    uniform = all(h == hidden_dims[0] for h in hidden_dims)
    if uniform:
        params = {
            "w1": ws[0],
            "w_rest": jnp.stack(ws[1:], axis=0),        # (N-1, H, H)
            "bgb": jnp.concatenate(bgbs, axis=0),       # (3N, H)
            "out_w": out_w,
            "out_b": out_b,
        }
    else:
        # Fallback: non-uniform hidden widths -> per-layer operands.
        params = {
            "w1": ws[0],
            "w_rest": list(ws[1:]),
            "bgb": list(bgbs),
            "out_w": out_w,
            "out_b": out_b,
        }
    return params


# ---------------------------------------------------------------------------
# Pure-JAX reference (two-pass LayerNorm, like PyTorch) for validation.
# ---------------------------------------------------------------------------
def simple_mlp_reference(params, x, out_dim):
    stacked = not isinstance(params["bgb"], (list, tuple))
    if stacked:
        n = params["bgb"].shape[0] // 3
        ws = [params["w1"]] + [params["w_rest"][i] for i in range(n - 1)]
        bgbs = [params["bgb"][3 * i:3 * i + 3] for i in range(n)]
    else:
        ws = [params["w1"]] + list(params["w_rest"])
        bgbs = list(params["bgb"])
    for w, bgb in zip(ws, bgbs):
        b, gamma, beta = bgb[0], bgb[1], bgb[2]
        y = x @ w + b
        mean = jnp.mean(y, axis=-1, keepdims=True)
        var = jnp.mean((y - mean) ** 2, axis=-1, keepdims=True)
        y = (y - mean) / jnp.sqrt(var + LN_EPS)
        y = y * gamma + beta
        x = jnp.maximum(y, 0.0)
    out = x @ params["out_w"] + params["out_b"]
    return out[:, :out_dim]


# ---------------------------------------------------------------------------
if __name__ == "__main__":
    key = jax.random.PRNGKey(0)
    batch = 4
    input_dim = 64
    hidden_dims = [128, 128]
    output_dim = 8

    key, kp, kx = jax.random.split(key, 3)
    params = init_simple_mlp(kp, input_dim, hidden_dims, output_dim)
    x = jax.random.normal(kx, (batch, input_dim), jnp.float32)

    out = simple_mlp_forward(params, x, out_dim=output_dim)
    out = jax.block_until_ready(out)

    ref = simple_mlp_reference(params, x, output_dim)
    assert out.shape == (batch, output_dim)
    assert jnp.allclose(out, ref, atol=1e-4, rtol=1e-4), "mismatch vs reference"

    print("KERNEL_OK")
</pallas_src>

<mosaic_0001>
module attributes {stable_mosaic.version = 11 : i64} {
  func.func @kernel(%arg0: memref<8x64xf32, #tpu.memory_space<vmem>>, %arg1: memref<64x128xf32, #tpu.memory_space<vmem>>, %arg2: memref<1x128x128xf32, #tpu.memory_space<vmem>>, %arg3: memref<6x128xf32, #tpu.memory_space<vmem>>, %arg4: memref<128x128xf32, #tpu.memory_space<vmem>>, %arg5: memref<1x128xf32, #tpu.memory_space<vmem>>, %arg6: memref<8x128xf32, #tpu.memory_space<vmem>>) attributes {dimension_semantics = [], scalar_prefetch = 0 : i64, scratch_operands = 0 : i64, tpu.core_type = #tpu.core_type<tc>} {
    %c0 = arith.constant 0 : index
    %c0_0 = arith.constant 0 : index
    %0 = vector.load %arg0[%c0, %c0_0] : memref<8x64xf32, #tpu.memory_space<vmem>>, vector<8x64xf32>
    %c0_1 = arith.constant 0 : index
    %c0_2 = arith.constant 0 : index
    %1 = vector.load %arg1[%c0_1, %c0_2] : memref<64x128xf32, #tpu.memory_space<vmem>>, vector<64x128xf32>
    %cst = arith.constant dense<0.000000e+00> : vector<8x128xf32>
    %2 = tpu.matmul %0, %1, %cst {dimension_numbers = #tpu.dot_dimension_numbers<[1], [0], [0], [1], [0, 0, 1, 1], [], []>} : vector<8x64xf32>, vector<64x128xf32>, vector<8x128xf32> -> vector<8x128xf32>
    %c0_3 = arith.constant 0 : index
    %c0_4 = arith.constant 0 : index
    %3 = vector.load %arg3[%c0_3, %c0_4] : memref<6x128xf32, #tpu.memory_space<vmem>>, vector<1x128xf32>
    %4 = vector.broadcast %3 : vector<1x128xf32> to vector<8x128xf32>
    %5 = arith.addf %2, %4 : vector<8x128xf32>
    %cst_5 = arith.constant dense<0.000000e+00> : vector<8xf32>
    %6 = vector.multi_reduction <add>, %5, %cst_5 [1] : vector<8x128xf32> to vector<8xf32>
    %7 = vector.shape_cast %6 : vector<8xf32> to vector<8x1xf32>
    %8 = arith.mulf %5, %5 : vector<8x128xf32>
    %cst_6 = arith.constant dense<0.000000e+00> : vector<8xf32>
    %9 = vector.multi_reduction <add>, %8, %cst_6 [1] : vector<8x128xf32> to vector<8xf32>
    %10 = vector.shape_cast %9 : vector<8xf32> to vector<8x1xf32>
    %cst_7 = arith.constant 7.812500e-03 : f32
    %11 = vector.broadcast %cst_7 : f32 to vector<8x1xf32>
    %12 = arith.mulf %7, %11 : vector<8x1xf32>
    %cst_8 = arith.constant 7.812500e-03 : f32
    %13 = vector.broadcast %cst_8 : f32 to vector<8x1xf32>
    %14 = arith.mulf %10, %13 : vector<8x1xf32>
    %15 = arith.mulf %12, %12 : vector<8x1xf32>
    %16 = arith.subf %14, %15 : vector<8x1xf32>
    %cst_9 = arith.constant 0.000000e+00 : f32
    %17 = vector.broadcast %cst_9 : f32 to vector<8x1xf32>
    %18 = arith.maximumf %16, %17 : vector<8x1xf32>
    %19 = vector.broadcast %12 : vector<8x1xf32> to vector<8x128xf32>
    %20 = arith.subf %5, %19 : vector<8x128xf32>
    %cst_10 = arith.constant 9.99999974E-6 : f32
    %21 = vector.broadcast %cst_10 : f32 to vector<8x1xf32>
    %22 = arith.addf %18, %21 : vector<8x1xf32>
    %23 = math.rsqrt %22 : vector<8x1xf32>
    %24 = vector.broadcast %23 : vector<8x1xf32> to vector<8x128xf32>
    %25 = arith.mulf %20, %24 : vector<8x128xf32>
    %c1 = arith.constant 1 : index
    %c0_11 = arith.constant 0 : index
    %26 = vector.load %arg3[%c1, %c0_11] : memref<6x128xf32, #tpu.memory_space<vmem>>, vector<1x128xf32>
    %27 = vector.broadcast %26 : vector<1x128xf32> to vector<8x128xf32>
    %28 = arith.mulf %25, %27 : vector<8x128xf32>
    %c2 = arith.constant 2 : index
    %c0_12 = arith.constant 0 : index
    %29 = vector.load %arg3[%c2, %c0_12] : memref<6x128xf32, #tpu.memory_space<vmem>>, vector<1x128xf32>
    %30 = vector.broadcast %29 : vector<1x128xf32> to vector<8x128xf32>
    %31 = arith.addf %28, %30 : vector<8x128xf32>
    %cst_13 = arith.constant 0.000000e+00 : f32
    %32 = vector.broadcast %cst_13 : f32 to vector<8x128xf32>
    %33 = arith.maximumf %31, %32 : vector<8x128xf32>
    %c0_14 = arith.constant 0 : index
    %c0_15 = arith.constant 0 : index
    %c0_16 = arith.constant 0 : index
    %34 = vector.load %arg2[%c0_14, %c0_15, %c0_16] : memref<1x128x128xf32, #tpu.memory_space<vmem>>, vector<1x128x128xf32>
    %35 = vector.shape_cast %34 : vector<1x128x128xf32> to vector<128x128xf32>
    %cst_17 = arith.constant dense<0.000000e+00> : vector<8x128xf32>
    %36 = tpu.matmul %33, %35, %cst_17 {dimension_numbers = #tpu.dot_dimension_numbers<[1], [0], [0], [1], [0, 0, 1, 1], [], []>} : vector<8x128xf32>, vector<128x128xf32>, vector<8x128xf32> -> vector<8x128xf32>
    %c3 = arith.constant 3 : index
    %c0_18 = arith.constant 0 : index
    %37 = vector.load %arg3[%c3, %c0_18] : memref<6x128xf32, #tpu.memory_space<vmem>>, vector<1x128xf32>
    %38 = vector.broadcast %37 : vector<1x128xf32> to vector<8x128xf32>
    %39 = arith.addf %36, %38 : vector<8x128xf32>
    %cst_19 = arith.constant dense<0.000000e+00> : vector<8xf32>
    %40 = vector.multi_reduction <add>, %39, %cst_19 [1] : vector<8x128xf32> to vector<8xf32>
    %41 = vector.shape_cast %40 : vector<8xf32> to vector<8x1xf32>
    %42 = arith.mulf %39, %39 : vector<8x128xf32>
    %cst_20 = arith.constant dense<0.000000e+00> : vector<8xf32>
    %43 = vector.multi_reduction <add>, %42, %cst_20 [1] : vector<8x128xf32> to vector<8xf32>
    %44 = vector.shape_cast %43 : vector<8xf32> to vector<8x1xf32>
    %cst_21 = arith.constant 7.812500e-03 : f32
    %45 = vector.broadcast %cst_21 : f32 to vector<8x1xf32>
    %46 = arith.mulf %41, %45 : vector<8x1xf32>
    %cst_22 = arith.constant 7.812500e-03 : f32
    %47 = vector.broadcast %cst_22 : f32 to vector<8x1xf32>
    %48 = arith.mulf %44, %47 : vector<8x1xf32>
    %49 = arith.mulf %46, %46 : vector<8x1xf32>
    %50 = arith.subf %48, %49 : vector<8x1xf32>
    %cst_23 = arith.constant 0.000000e+00 : f32
    %51 = vector.broadcast %cst_23 : f32 to vector<8x1xf32>
    %52 = arith.maximumf %50, %51 : vector<8x1xf32>
    %53 = vector.broadcast %46 : vector<8x1xf32> to vector<8x128xf32>
    %54 = arith.subf %39, %53 : vector<8x128xf32>
    %cst_24 = arith.constant 9.99999974E-6 : f32
    %55 = vector.broadcast %cst_24 : f32 to vector<8x1xf32>
    %56 = arith.addf %52, %55 : vector<8x1xf32>
    %57 = math.rsqrt %56 : vector<8x1xf32>
    %58 = vector.broadcast %57 : vector<8x1xf32> to vector<8x128xf32>
    %59 = arith.mulf %54, %58 : vector<8x128xf32>
    %c4 = arith.constant 4 : index
    %c0_25 = arith.constant 0 : index
    %60 = vector.load %arg3[%c4, %c0_25] : memref<6x128xf32, #tpu.memory_space<vmem>>, vector<1x128xf32>
    %61 = vector.broadcast %60 : vector<1x128xf32> to vector<8x128xf32>
    %62 = arith.mulf %59, %61 : vector<8x128xf32>
    %c5 = arith.constant 5 : index
    %c0_26 = arith.constant 0 : index
    %63 = vector.load %arg3[%c5, %c0_26] : memref<6x128xf32, #tpu.memory_space<vmem>>, vector<1x128xf32>
    %64 = vector.broadcast %63 : vector<1x128xf32> to vector<8x128xf32>
    %65 = arith.addf %62, %64 : vector<8x128xf32>
    %cst_27 = arith.constant 0.000000e+00 : f32
    %66 = vector.broadcast %cst_27 : f32 to vector<8x128xf32>
    %67 = arith.maximumf %65, %66 : vector<8x128xf32>
    %c0_28 = arith.constant 0 : index
    %c0_29 = arith.constant 0 : index
    %68 = vector.load %arg4[%c0_28, %c0_29] : memref<128x128xf32, #tpu.memory_space<vmem>>, vector<128x128xf32>
    %cst_30 = arith.constant dense<0.000000e+00> : vector<8x128xf32>
    %69 = tpu.matmul %67, %68, %cst_30 {dimension_numbers = #tpu.dot_dimension_numbers<[1], [0], [0], [1], [0, 0, 1, 1], [], []>} : vector<8x128xf32>, vector<128x128xf32>, vector<8x128xf32> -> vector<8x128xf32>
    %c0_31 = arith.constant 0 : index
    %c0_32 = arith.constant 0 : index
    %70 = vector.load %arg5[%c0_31, %c0_32] : memref<1x128xf32, #tpu.memory_space<vmem>>, vector<1x128xf32>
    %71 = vector.broadcast %70 : vector<1x128xf32> to vector<8x128xf32>
    %72 = arith.addf %69, %71 : vector<8x128xf32>
    %c0_33 = arith.constant 0 : index
    %c0_34 = arith.constant 0 : index
    %73 = vector.load %arg6[%c0_33, %c0_34] : memref<8x128xf32, #tpu.memory_space<vmem>>, vector<8x128xf32>
    tpu.vector_store %arg6[%c0_33, %c0_34], %72 {strides = array<i32>} : memref<8x128xf32, #tpu.memory_space<vmem>>, vector<8x128xf32>,
    return
  }
}

</mosaic_0001>

<llo_original>
// kernel: simple_mlp_forward.1
$region0: #{simple_mlp_forward.1}
  #allocation0 [shape = 'u32[]', space=smem, size = 0x4, offset = 0x4, fixed_abs, tag = 'smem constant byte address 0x4 - core index']
  #allocation1 [shape = 'u32[144,128]{1,0:T(1,128)}', space=vmem, size = 0x12000, scoped, tag = 'internal scratch']
  %s0 = inlined_call_operand.vmem [shape: f32[8,64], index: 0, kind: input, shape index: {}]
  %s1 = inlined_call_operand.hbm [shape: f32[64,128], index: 1, kind: input, shape index: {}]
  %s2 = inlined_call_operand.hbm [shape: f32[1,128,128], index: 2, kind: input, shape index: {}]
  %s3 = inlined_call_operand.vmem [shape: f32[6,128], index: 3, kind: input, shape index: {}]
  %s4 = inlined_call_operand.hbm [shape: f32[128,128], index: 4, kind: input, shape index: {}]
  %s5 = inlined_call_operand.vmem [shape: f32[1,128], index: 5, kind: input, shape index: {}]
  %s6 = inlined_call_operand.vmem [shape: f32[8,128], index: 6, kind: output, shape index: {}]
  %s7 = sld [smem:[#allocation0]]
  $region46: #{simple_mlp_forward.1} parent=0
    _
  %s9 = ssub.s32 1, %s7
  %s10 = scalar_select 0, %s9, %s7
  $region1: #{simple_mlp_forward.1} parent=0
    #allocation2 [shape = 'u8[32768]{0}', space=vmem, size = 0x8000, scoped, tag = 'input window, operand 1, single buffered']
    #allocation3 [shape = 's32[1]{0}', space=sflag, size = 0x4, scoped, tag = 'scoped memory for simple_mlp_forward.1']
    #allocation4 [shape = 'u8[65536]{0}', space=vmem, size = 0x10000, scoped, tag = 'input window, operand 2, single buffered']
    #allocation5 [shape = 's32[1]{0}', space=sflag, size = 0x4, scoped, tag = 'scoped memory for simple_mlp_forward.1']
    #allocation6 [shape = 'u8[65536]{0}', space=vmem, size = 0x10000, scoped, tag = 'input window, operand 4, single buffered']
    %11 = vsyncpa [#allocation3], 0
    %12 = vsyncpa [#allocation5], 0
    // Predicated region
    $region2: #{simple_mlp_forward.1} parent=1 // pred_check
      _
    $region3: #{simple_mlp_forward.1} parent=1 // pred_check_branch
      %14 = sbr.rel (0) target = $region5
    $region4: #{simple_mlp_forward.1} parent=1 // pred_region
      _
    $region5: #{simple_mlp_forward.1} parent=1 // pred_fallthru
      _
    // Predicated region
    $region6: #{simple_mlp_forward.1} parent=1 // pred_check
      _
    $region7: #{simple_mlp_forward.1} parent=1 // pred_check_branch
      %16 = sbr.rel (0) target = $region9
    $region8: #{simple_mlp_forward.1} parent=1 // pred_region
      %s18 = ssub.s32 1024, 1024
      %19 = vsyncadd [#allocation3], %s18
      %s20 = sshll.u32 [#allocation2], 4
      %s21 = int_to_ptr.vmem [resolvable:$true] %s20
      %26 = dma.hbm_to_vmem [thread:$0]  %s1, 1024, %s21, [#allocation3], 128, 128, 8
    $region9: #{simple_mlp_forward.1} parent=1 // pred_fallthru
      _
    // Predicated region
    $region10: #{simple_mlp_forward.1} parent=1 // pred_check
      _
    $region11: #{simple_mlp_forward.1} parent=1 // pred_check_branch
      %28 = sbr.rel (0) target = $region13
    $region12: #{simple_mlp_forward.1} parent=1 // pred_region
      %s30 = ssub.s32 2048, 2048
      %31 = vsyncadd [#allocation5], %s30
      %s32 = sshll.u32 [#allocation4], 4
      %s33 = int_to_ptr.vmem [resolvable:$true] %s32
      %38 = dma.hbm_to_vmem [thread:$0]  %s2, 2048, %s33, [#allocation5], 128, 128, 8
    $region13: #{simple_mlp_forward.1} parent=1 // pred_fallthru
      _
    // Predicated region
    $region14: #{simple_mlp_forward.1} parent=1 // pred_check
      _
    $region15: #{simple_mlp_forward.1} parent=1 // pred_check_branch
      %40 = sbr.rel (0) target = $region17
    $region16: #{simple_mlp_forward.1} parent=1 // pred_region
      _
    $region17: #{simple_mlp_forward.1} parent=1 // pred_fallthru
      _
    // Predicated region
    $region18: #{simple_mlp_forward.1} parent=1 // pred_check
      _
    $region19: #{simple_mlp_forward.1} parent=1 // pred_check_branch
      %42 = sbr.rel (0) target = $region21
    $region20: #{simple_mlp_forward.1} parent=1 // pred_region
      %s44 = ssub.s32 2048, 2048
      %45 = vsyncadd [#allocation5], %s44
      %s46 = sshll.u32 [#allocation6], 4
      %s47 = int_to_ptr.vmem [resolvable:$true] %s46
      %52 = dma.hbm_to_vmem [thread:$0]  %s4, 2048, %s47, [#allocation5], 128, 128, 8
    $region21: #{simple_mlp_forward.1} parent=1 // pred_fallthru
      _
    // Predicated region
    $region22: #{simple_mlp_forward.1} parent=1 // pred_check
      _
    $region23: #{simple_mlp_forward.1} parent=1 // pred_check_branch
      %54 = sbr.rel (0) target = $region25
    $region24: #{simple_mlp_forward.1} parent=1 // pred_region
      _
    $region25: #{simple_mlp_forward.1} parent=1 // pred_fallthru
      _
    // Predicated region
    $region26: #{simple_mlp_forward.1} parent=1 // pred_check
      _
    $region27: #{simple_mlp_forward.1} parent=1 // pred_check_branch
      %56 = sbr.rel (0) target = $region29
    $region28: #{simple_mlp_forward.1} parent=1 // pred_region
      %57 = dma.done [#allocation3], 1024
    $region29: #{simple_mlp_forward.1} parent=1 // pred_fallthru
      _
    // Predicated region
    $region30: #{simple_mlp_forward.1} parent=1 // pred_check
      _
    $region31: #{simple_mlp_forward.1} parent=1 // pred_check_branch
      %59 = sbr.rel (0) target = $region33
    $region32: #{simple_mlp_forward.1} parent=1 // pred_region
      %60 = dma.done [#allocation5], 2048
    $region33: #{simple_mlp_forward.1} parent=1 // pred_fallthru
      _
    // Predicated region
    $region34: #{simple_mlp_forward.1} parent=1 // pred_check
      _
    $region35: #{simple_mlp_forward.1} parent=1 // pred_check_branch
      %62 = sbr.rel (0) target = $region37
    $region36: #{simple_mlp_forward.1} parent=1 // pred_region
      %63 = dma.done [#allocation5], 2048
    $region37: #{simple_mlp_forward.1} parent=1 // pred_fallthru
      _
    %v64 = vld [vmem:[%s0] sm:$0xff]
    %v65 = vld [vmem:[#allocation2] sm:$0xff]
    %v66 = vld [vmem:[#allocation2 + $0x8] sm:$0xff]
    %v67 = vld [vmem:[#allocation2 + $0x10] sm:$0xff]
    %v68 = vld [vmem:[#allocation2 + $0x18] sm:$0xff]
    %v69 = vld [vmem:[#allocation2 + $0x20] sm:$0xff]
    %v70 = vld [vmem:[#allocation2 + $0x28] sm:$0xff]
    %v71 = vld [vmem:[#allocation2 + $0x30] sm:$0xff]
    %v72 = vld [vmem:[#allocation2 + $0x38] sm:$0xff]
    %v73 = vld [vmem:[%s3] sm:$0x1]
    %v74 = vlaneseq
    %v75 = vshrl.u32 %v74, 7
    %v76 = vsub.s32 0, %v75
    %v77 = vrot.slane %v73, %v76
    %vm78 = vcmask 523264
    %v80 = vsel %vm78, %v64, 0
    %82 = vmatprep.subr.mxu0 0.0
    %83 = vmatpush1.msra.mxu0 0.0
    %84 = vmatprep.subr.mxu0 0.0
    %85 = vmatpush1.msra.mxu0 0.0
    %86 = vmatprep.subr.mxu0 0.0
    %87 = vmatpush1.msra.mxu0 0.0
    %88 = vmatprep.subr.mxu0 0.0
    %89 = vmatpush1.msra.mxu0 0.0
    %90 = vmatprep.subr.mxu0 0.0
    %91 = vmatpush1.msra.mxu0 0.0
    %92 = vmatprep.subr.mxu0 0.0
    %93 = vmatpush1.msra.mxu0 0.0
    %94 = vmatprep.subr.mxu0 0.0
    %95 = vmatpush1.msra.mxu0 0.0
    %96 = vmatprep.subr.mxu0 0.0
    %97 = vmatpush1.msra.mxu0 0.0
    %98 = vmatprep.subr.mxu0 0.0
    %99 = vmatpush1.msra.mxu0 %v72
    %100 = vmatprep.subr.mxu0 0.0
    %101 = vmatpush1.msra.mxu0 %v71
    %102 = vmatprep.subr.mxu0 0.0
    %103 = vmatpush1.msra.mxu0 %v70
    %104 = vmatprep.subr.mxu0 0.0
    %105 = vmatpush1.msra.mxu0 %v69
    %106 = vmatprep.subr.mxu0 0.0
    %107 = vmatpush1.msra.mxu0 %v68
    %108 = vmatprep.subr.mxu0 0.0
    %109 = vmatpush1.msra.mxu0 %v67
    %110 = vmatprep.subr.mxu0 0.0
    %111 = vmatpush1.msra.mxu0 %v66
    %112 = vmatprep.subr.mxu0 0.0
    %113 = vmatpush1.msra.mxu0 %v65
    %114 = vmatprep.subr.mxu0 0.0
    %115 = vmatpush2.msra.mxu0 0.0
    %116 = vmatprep.subr.mxu0 0.0
    %117 = vmatpush2.msra.mxu0 0.0
    %118 = vmatprep.subr.mxu0 0.0
    %119 = vmatpush2.msra.mxu0 0.0
    %120 = vmatprep.subr.mxu0 0.0
    %121 = vmatpush2.msra.mxu0 0.0
    %122 = vmatprep.subr.mxu0 0.0
    %123 = vmatpush2.msra.mxu0 0.0
    %124 = vmatprep.subr.mxu0 0.0
    %125 = vmatpush2.msra.mxu0 0.0
    %126 = vmatprep.subr.mxu0 0.0
    %127 = vmatpush2.msra.mxu0 0.0
    %128 = vmatprep.subr.mxu0 0.0
    %129 = vmatpush2.msra.mxu0 0.0
    %130 = vmatprep.subr.mxu0 0.0
    %131 = vmatpush2.msra.mxu0 0.0
    %132 = vmatprep.subr.mxu0 0.0
    %133 = vmatpush2.msra.mxu0 0.0
    %134 = vmatprep.subr.mxu0 0.0
    %135 = vmatpush2.msra.mxu0 0.0
    %136 = vmatprep.subr.mxu0 0.0
    %137 = vmatpush2.msra.mxu0 0.0
    %138 = vmatprep.subr.mxu0 0.0
    %139 = vmatpush2.msra.mxu0 0.0
    %140 = vmatprep.subr.mxu0 0.0
    %141 = vmatpush2.msra.mxu0 0.0
    %142 = vmatprep.subr.mxu0 0.0
    %143 = vmatpush2.msra.mxu0 0.0
    %144 = vmatprep.subr.mxu0 0.0
    %145 = vmatpush2.msra.mxu0 0.0
    %146 = vmatprep.mubr.f32.mxu0 0.0
    %147 = vmatmul.mubr.f32.gmra.mxu0 %v80
    %v148 = vpop.f32.mrf.mxu0
    %v149 = vadd.f32 %v77, %v148
    %v150 = vpop.f32.mrf.mxu0
    %151 = vdwg.mxu0
    %152 = vadd.xlane.f32.xlu0 %v149
    %v153 = vpop.xlane.xlu0 %152
    %v154 = vmul.f32 %v149, %v149
    %155 = vadd.xlane.f32.xlu0 %v154
    %v156 = vpop.xlane.xlu0 %155
    %v157 = vmul.f32 %v153, 0.0078125
    %v158 = vmul.f32 %v156, 0.0078125
    %v159 = vmul.f32 %v157, %v157
    %v160 = vsub.f32 %v158, %v159
    %v161 = vmax.f32 %v160, 0.0
    %v162 = vsub.f32 %v149, %v157
    %v163 = vadd.f32 %v161, 1e-05
    %v164 = vrsqrt.pop %v163
    %v165 = vmul.f32 %v162, %v164
    %v166 = vld [vmem:[%s3 + $0x1] sm:$0x1]
    %v167 = vlaneseq
    %v168 = vshrl.u32 %v167, 7
    %v169 = vsub.s32 0, %v168
    %v170 = vrot.slane %v166, %v169
    %v171 = vmul.f32 %v165, %v170
    %v172 = vld [vmem:[%s3 + $0x2] sm:$0x1]
    %v173 = vlaneseq
    %v174 = vshrl.u32 %v173, 7
    %v175 = vsub.s32 0, %v174
    %v176 = vrot.slane %v172, %v175
    %v177 = vadd.f32 %v171, %v176
    %v178 = vmax.f32 %v177, 0.0
    %v179 = vld [vmem:[#allocation4] sm:$0xff]
    %v180 = vld [vmem:[#allocation4 + $0x8] sm:$0xff]
    %v181 = vld [vmem:[#allocation4 + $0x10] sm:$0xff]
    %v182 = vld [vmem:[#allocation4 + $0x18] sm:$0xff]
    %v183 = vld [vmem:[#allocation4 + $0x20] sm:$0xff]
    %v184 = vld [vmem:[#allocation4 + $0x28] sm:$0xff]
    %v185 = vld [vmem:[#allocation4 + $0x30] sm:$0xff]
    %v186 = vld [vmem:[#allocation4 + $0x38] sm:$0xff]
    %v187 = vld [vmem:[#allocation4 + $0x40] sm:$0xff]
    %v188 = vld [vmem:[#allocation4 + $0x48] sm:$0xff]
    %v189 = vld [vmem:[#allocation4 + $0x50] sm:$0xff]
    %v190 = vld [vmem:[#allocation4 + $0x58] sm:$0xff]
    %v191 = vld [vmem:[#allocation4 + $0x60] sm:$0xff]
    %v192 = vld [vmem:[#allocation4 + $0x68] sm:$0xff]
    %v193 = vld [vmem:[#allocation4 + $0x70] sm:$0xff]
    %v194 = vld [vmem:[#allocation4 + $0x78] sm:$0xff]
    %v195 = vld [vmem:[%s3 + $0x3] sm:$0x1]
    %v196 = vlaneseq
    %v197 = vshrl.u32 %v196, 7
    %v198 = vsub.s32 0, %v197
    %v199 = vrot.slane %v195, %v198
    %200 = vmatprep.subr.mxu0 0.0
    %201 = vmatpush1.msra.mxu0 %v194
    %202 = vmatprep.subr.mxu0 0.0
    %203 = vmatpush1.msra.mxu0 %v193
    %204 = vmatprep.subr.mxu0 0.0
    %205 = vmatpush1.msra.mxu0 %v192
    %206 = vmatprep.subr.mxu0 0.0
    %207 = vmatpush1.msra.mxu0 %v191
    %208 = vmatprep.subr.mxu0 0.0
    %209 = vmatpush1.msra.mxu0 %v190
    %210 = vmatprep.subr.mxu0 0.0
    %211 = vmatpush1.msra.mxu0 %v189
    %212 = vmatprep.subr.mxu0 0.0
    %213 = vmatpush1.msra.mxu0 %v188
    %214 = vmatprep.subr.mxu0 0.0
    %215 = vmatpush1.msra.mxu0 %v187
    %216 = vmatprep.subr.mxu0 0.0
    %217 = vmatpush1.msra.mxu0 %v186
    %218 = vmatprep.subr.mxu0 0.0
    %219 = vmatpush1.msra.mxu0 %v185
    %220 = vmatprep.subr.mxu0 0.0
    %221 = vmatpush1.msra.mxu0 %v184
    %222 = vmatprep.subr.mxu0 0.0
    %223 = vmatpush1.msra.mxu0 %v183
    %224 = vmatprep.subr.mxu0 0.0
    %225 = vmatpush1.msra.mxu0 %v182
    %226 = vmatprep.subr.mxu0 0.0
    %227 = vmatpush1.msra.mxu0 %v181
    %228 = vmatprep.subr.mxu0 0.0
    %229 = vmatpush1.msra.mxu0 %v180
    %230 = vmatprep.subr.mxu0 0.0
    %231 = vmatpush1.msra.mxu0 %v179
    %232 = vmatprep.subr.mxu0 0.0
    %233 = vmatpush2.msra.mxu0 0.0
    %234 = vmatprep.subr.mxu0 0.0
    %235 = vmatpush2.msra.mxu0 0.0
    %236 = vmatprep.subr.mxu0 0.0
    %237 = vmatpush2.msra.mxu0 0.0
    %238 = vmatprep.subr.mxu0 0.0
    %239 = vmatpush2.msra.mxu0 0.0
    %240 = vmatprep.subr.mxu0 0.0
    %241 = vmatpush2.msra.mxu0 0.0
    %242 = vmatprep.subr.mxu0 0.0
    %243 = vmatpush2.msra.mxu0 0.0
    %244 = vmatprep.subr.mxu0 0.0
    %245 = vmatpush2.msra.mxu0 0.0
    %246 = vmatprep.subr.mxu0 0.0
    %247 = vmatpush2.msra.mxu0 0.0
    %248 = vmatprep.subr.mxu0 0.0
    %249 = vmatpush2.msra.mxu0 0.0
    %250 = vmatprep.subr.mxu0 0.0
    %251 = vmatpush2.msra.mxu0 0.0
    %252 = vmatprep.subr.mxu0 0.0
    %253 = vmatpush2.msra.mxu0 0.0
    %254 = vmatprep.subr.mxu0 0.0
    %255 = vmatpush2.msra.mxu0 0.0
    %256 = vmatprep.subr.mxu0 0.0
    %257 = vmatpush2.msra.mxu0 0.0
    %258 = vmatprep.subr.mxu0 0.0
    %259 = vmatpush2.msra.mxu0 0.0
    %260 = vmatprep.subr.mxu0 0.0
    %261 = vmatpush2.msra.mxu0 0.0
    %262 = vmatprep.subr.mxu0 0.0
    %263 = vmatpush2.msra.mxu0 0.0
    %264 = vmatprep.mubr.f32.mxu0 0.0
    %265 = vmatmul.mubr.f32.gmra.mxu0 %v178
    %v266 = vpop.f32.mrf.mxu0
    %v267 = vadd.f32 %v199, %v266
    %v268 = vpop.f32.mrf.mxu0
    %269 = vdwg.mxu0
    %270 = vadd.xlane.f32.xlu0 %v267
    %v271 = vpop.xlane.xlu0 %270
    %v272 = vmul.f32 %v267, %v267
    %273 = vadd.xlane.f32.xlu0 %v272
    %v274 = vpop.xlane.xlu0 %273
    %v275 = vmul.f32 %v271, 0.0078125
    %v276 = vmul.f32 %v274, 0.0078125
    %v277 = vmul.f32 %v275, %v275
    %v278 = vsub.f32 %v276, %v277
    %v279 = vmax.f32 %v278, 0.0
    %v280 = vsub.f32 %v267, %v275
    %v281 = vadd.f32 %v279, 1e-05
    %v282 = vrsqrt.pop %v281
    %v283 = vmul.f32 %v280, %v282
    %v284 = vld [vmem:[%s3 + $0x4] sm:$0x1]
    %v285 = vlaneseq
    %v286 = vshrl.u32 %v285, 7
    %v287 = vsub.s32 0, %v286
    %v288 = vrot.slane %v284, %v287
    %v289 = vmul.f32 %v283, %v288
    %v290 = vld [vmem:[%s3 + $0x5] sm:$0x1]
    %v291 = vlaneseq
    %v292 = vshrl.u32 %v291, 7
    %v293 = vsub.s32 0, %v292
    %v294 = vrot.slane %v290, %v293
    %v295 = vadd.f32 %v289, %v294
    %v296 = vmax.f32 %v295, 0.0
    %v297 = vld [vmem:[#allocation6] sm:$0xff]
    %v298 = vld [vmem:[#allocation6 + $0x8] sm:$0xff]
    %v299 = vld [vmem:[#allocation6 + $0x10] sm:$0xff]
    %v300 = vld [vmem:[#allocation6 + $0x18] sm:$0xff]
    %v301 = vld [vmem:[#allocation6 + $0x20] sm:$0xff]
    %v302 = vld [vmem:[#allocation6 + $0x28] sm:$0xff]
    %v303 = vld [vmem:[#allocation6 + $0x30] sm:$0xff]
    %v304 = vld [vmem:[#allocation6 + $0x38] sm:$0xff]
    %v305 = vld [vmem:[#allocation6 + $0x40] sm:$0xff]
    %v306 = vld [vmem:[#allocation6 + $0x48] sm:$0xff]
    %v307 = vld [vmem:[#allocation6 + $0x50] sm:$0xff]
    %v308 = vld [vmem:[#allocation6 + $0x58] sm:$0xff]
    %v309 = vld [vmem:[#allocation6 + $0x60] sm:$0xff]
    %v310 = vld [vmem:[#allocation6 + $0x68] sm:$0xff]
    %v311 = vld [vmem:[#allocation6 + $0x70] sm:$0xff]
    %v312 = vld [vmem:[#allocation6 + $0x78] sm:$0xff]
    %v313 = vld [vmem:[%s5] sm:$0x1]
    %v315 = vlaneseq
    %v316 = vshrl.u32 %v315, 7
    %v317 = vsub.s32 0, %v316
    %v318 = vrot.slane %v313, %v317
    %320 = vmatprep.subr.mxu0 0.0
    %321 = vmatpush1.msra.mxu0 %v312
    %322 = vmatprep.subr.mxu0 0.0
    %323 = vmatpush1.msra.mxu0 %v311
    %324 = vmatprep.subr.mxu0 0.0
    %325 = vmatpush1.msra.mxu0 %v310
    %326 = vmatprep.subr.mxu0 0.0
    %327 = vmatpush1.msra.mxu0 %v309
    %328 = vmatprep.subr.mxu0 0.0
    %329 = vmatpush1.msra.mxu0 %v308
    %330 = vmatprep.subr.mxu0 0.0
    %331 = vmatpush1.msra.mxu0 %v307
    %332 = vmatprep.subr.mxu0 0.0
    %333 = vmatpush1.msra.mxu0 %v306
    %334 = vmatprep.subr.mxu0 0.0
    %335 = vmatpush1.msra.mxu0 %v305
    %336 = vmatprep.subr.mxu0 0.0
    %337 = vmatpush1.msra.mxu0 %v304
    %338 = vmatprep.subr.mxu0 0.0
    %339 = vmatpush1.msra.mxu0 %v303
    %340 = vmatprep.subr.mxu0 0.0
    %341 = vmatpush1.msra.mxu0 %v302
    %342 = vmatprep.subr.mxu0 0.0
    %343 = vmatpush1.msra.mxu0 %v301
    %344 = vmatprep.subr.mxu0 0.0
    %345 = vmatpush1.msra.mxu0 %v300
    %346 = vmatprep.subr.mxu0 0.0
    %347 = vmatpush1.msra.mxu0 %v299
    %348 = vmatprep.subr.mxu0 0.0
    %349 = vmatpush1.msra.mxu0 %v298
    %350 = vmatprep.subr.mxu0 0.0
    %351 = vmatpush1.msra.mxu0 %v297
    %352 = vmatprep.subr.mxu0 0.0
    %353 = vmatpush2.msra.mxu0 0.0
    %354 = vmatprep.subr.mxu0 0.0
    %355 = vmatpush2.msra.mxu0 0.0
    %356 = vmatprep.subr.mxu0 0.0
    %357 = vmatpush2.msra.mxu0 0.0
    %358 = vmatprep.subr.mxu0 0.0
    %359 = vmatpush2.msra.mxu0 0.0
    %360 = vmatprep.subr.mxu0 0.0
    %361 = vmatpush2.msra.mxu0 0.0
    %362 = vmatprep.subr.mxu0 0.0
    %363 = vmatpush2.msra.mxu0 0.0
    %364 = vmatprep.subr.mxu0 0.0
    %365 = vmatpush2.msra.mxu0 0.0
    %366 = vmatprep.subr.mxu0 0.0
    %367 = vmatpush2.msra.mxu0 0.0
    %368 = vmatprep.subr.mxu0 0.0
    %369 = vmatpush2.msra.mxu0 0.0
    %370 = vmatprep.subr.mxu0 0.0
    %371 = vmatpush2.msra.mxu0 0.0
    %372 = vmatprep.subr.mxu0 0.0
    %373 = vmatpush2.msra.mxu0 0.0
    %374 = vmatprep.subr.mxu0 0.0
    %375 = vmatpush2.msra.mxu0 0.0
    %376 = vmatprep.subr.mxu0 0.0
    %377 = vmatpush2.msra.mxu0 0.0
    %378 = vmatprep.subr.mxu0 0.0
    %379 = vmatpush2.msra.mxu0 0.0
    %380 = vmatprep.subr.mxu0 0.0
    %381 = vmatpush2.msra.mxu0 0.0
    %382 = vmatprep.subr.mxu0 0.0
    %383 = vmatpush2.msra.mxu0 0.0
    %384 = vmatprep.mubr.f32.mxu0 0.0
    %385 = vmatmul.mubr.f32.gmra.mxu0 %v296
    %v386 = vpop.f32.mrf.mxu0
    %v387 = vadd.f32 %v318, %v386
    %v388 = vpop.f32.mrf.mxu0
    %389 = vdwg.mxu0
    %390 = vst [vmem:[%s6] sm:$0xff] %v387
    // Predicated region
    $region38: #{simple_mlp_forward.1} parent=1 // pred_check
      _
    $region39: #{simple_mlp_forward.1} parent=1 // pred_check_branch
      %392 = sbr.rel (0) target = $region41
    $region40: #{simple_mlp_forward.1} parent=1 // pred_region
      _
    $region41: #{simple_mlp_forward.1} parent=1 // pred_fallthru
      _
    // Predicated region
    $region42: #{simple_mlp_forward.1} parent=1 // pred_check
      _
    $region43: #{simple_mlp_forward.1} parent=1 // pred_check_branch
      %394 = sbr.rel (0) target = $region45
    $region44: #{simple_mlp_forward.1} parent=1 // pred_region
      _
    $region45: #{simple_mlp_forward.1} parent=1 // pred_fallthru
      _
    %395 = vsyncpa [#allocation3], 1
    %396 = vsyncpa [#allocation5], 1

</llo_original>
